<compile_context>
chip_gen: v6e
topology: v6e:2x2x1
jax: 0.10.0
libtpu: 0.0.40
codegen_flags: <defaults>
</compile_context>

<pallas_src>
import jax
import jax.numpy as jnp
from jax.experimental import pallas as pl
from jax.experimental.pallas import tpu as pltpu


# ----------------------------- Pallas kernel -----------------------------
def _make_ffn_kernel(use_bf16: bool, approx_gelu: bool):
    """Build the kernel body with trace-time-static dtype / activation choices."""
    def kernel(x_ref, w1_ref, b1_ref, w2_ref, b2_ref, o_ref):
        # (C, Mt) tile; keep an f32 copy for the residual add.
        x_f32 = x_ref[...].astype(jnp.float32)
        xin = x_f32.astype(jnp.bfloat16) if use_bf16 else x_f32

        # fc1: 1x1 conv + folded BN (bias in f32) + GELU.
        h = jnp.dot(w1_ref[...], xin, preferred_element_type=jnp.float32) + b1_ref[...]
        if approx_gelu:
            # tanh-approx GELU: the transcendental goes to the EUP slot instead
            # of a long erf polynomial on the 4 VALU slots.
            c = jnp.float32(0.7978845608028654)  # sqrt(2/pi)
            h = 0.5 * h * (1.0 + jnp.tanh(c * (h + jnp.float32(0.044715) * h * h * h)))
        else:
            # Exact erf GELU (torch nn.GELU default).
            h = 0.5 * h * (1.0 + jax.lax.erf(h * jnp.float32(0.7071067811865476)))

        # Bound the live (hid, Mt) intermediate / feed the MXU bf16 operands.
        if use_bf16:
            h = h.astype(jnp.bfloat16)

        # fc2: 1x1 conv + folded BN.
        out = jnp.dot(w2_ref[...], h, preferred_element_type=jnp.float32) + b2_ref[...]

        # Residual add (DropPath(0.0) == identity), done in f32.
        o_ref[...] = (out + x_f32).astype(o_ref.dtype)

    return kernel


# --------------------------- tiling / chip hints ---------------------------
def _chip_hints():
    """(vmem_capacity_bytes, min_grid_steps) with safe fallbacks."""
    vmem_cap = 64 * 1024 * 1024  # conservative fallback (v7x per-TC physical)
    try:
        vmem_cap = int(pltpu.get_tpu_info().vmem_capacity_bytes)
    except Exception:
        pass
    # Single-TC chips (v5e/v6e) may collapse to one grid step; multi-TC chips
    # (v7x, v4/v5p megacore, or unknown) keep >= 2 parallel steps.
    min_steps = 2
    try:
        kind = jax.devices()[0].device_kind.lower()
        if any(tag in kind for tag in ("v5e", "v5 lite", "v6e", "v6 lite", "v6")):
            min_steps = 1
    except Exception:
        pass
    return vmem_cap, min_steps


def _est_vmem_bytes(C, hid, m_tile, w_bytes):
    io = 4 * C * m_tile * 4                      # x + out tiles, double-buffered, f32
    wts = 2 * hid * C * w_bytes                  # single-buffered resident weights
    bias = (hid + C) * 128 * 4                   # (·,1) biases pad to a full lane
    inter = 2 * hid * m_tile * 4                 # f32 hidden intermediate + temps
    return io + wts + bias + inter


def _pick_m_tile(M, C, hid, w_bytes, budget, min_steps):
    """Largest lane-dense (multiple-of-128) divisor of M under the VMEM budget."""
    cands = [d for d in range(128, M + 1, 128) if M % d == 0]
    if not cands:
        # No 128-multiple divisor (small or ragged M): single full-extent block.
        return M
    narrowed = [d for d in cands if M // d >= min_steps]
    if narrowed:
        cands = narrowed
    fitting = [d for d in cands if _est_vmem_bytes(C, hid, d, w_bytes) <= budget]
    return max(fitting) if fitting else min(cands)


# ----------------------------- wrapper -----------------------------
def ffn_forward(x_nchw, params, *, m_tile=None, use_bf16=False, approx_gelu=False):
    B, C, H, W = x_nchw.shape
    N = H * W
    M = B * N
    w1, b1, w2, b2 = params
    hid = w1.shape[0]

    # Fold the batch axis into the node/lane axis: (B,C,H,W) -> (C, B*N).
    # (For very large, HBM-bound N one could skip this transpose and grid over
    #  B instead; at ViG node counts the wide lane-dense RHS wins.)
    x2d = jnp.transpose(x_nchw.reshape(B, C, N), (1, 0, 2)).reshape(C, M)

    # Cast weights once in the wrapper when running the bf16 MXU path.
    w_dtype = jnp.bfloat16 if use_bf16 else w1.dtype
    w1c = w1.astype(w_dtype)
    w2c = w2.astype(w_dtype)
    w_bytes = jnp.dtype(w_dtype).itemsize

    vmem_cap, min_steps = _chip_hints()
    budget = int(0.4 * vmem_cap)  # leave headroom for compiler scratch / pipelining
    if m_tile is None:
        m_tile = _pick_m_tile(M, C, hid, w_bytes, budget, min_steps)
    assert M % m_tile == 0

    est = _est_vmem_bytes(C, hid, m_tile, w_bytes)
    vmem_limit = int(min(vmem_cap, max(32 * 1024 * 1024, 2 * est)))

    resident = pl.Buffered(1)  # constant index_map -> never re-fetched; 1 buffer is enough

    out2d = pl.pallas_call(
        _make_ffn_kernel(use_bf16, approx_gelu),
        out_shape=jax.ShapeDtypeStruct((C, M), x_nchw.dtype),
        grid_spec=pltpu.PrefetchScalarGridSpec(
            num_scalar_prefetch=0,
            grid=(M // m_tile,),
            in_specs=[
                pl.BlockSpec((C, m_tile), lambda j: (0, j)),                       # x tile
                pl.BlockSpec((hid, C), lambda j: (0, 0), pipeline_mode=resident),  # fc1 weight
                pl.BlockSpec((hid, 1), lambda j: (0, 0), pipeline_mode=resident),  # fc1 bias
                pl.BlockSpec((C, hid), lambda j: (0, 0), pipeline_mode=resident),  # fc2 weight
                pl.BlockSpec((C, 1), lambda j: (0, 0), pipeline_mode=resident),    # fc2 bias
            ],
            out_specs=pl.BlockSpec((C, m_tile), lambda j: (0, j)),
        ),
        compiler_params=pltpu.CompilerParams(
            dimension_semantics=("parallel",),
            vmem_limit_bytes=vmem_limit,
        ),
    )(x2d, w1c, b1, w2c, b2)

    return jnp.transpose(out2d.reshape(C, B, N), (1, 0, 2)).reshape(B, C, H, W)


# -------------------- parameter construction (synthetic) --------------------
def make_params(key, in_channels, hidden_channels, eps=1e-5):
    """Deterministic Conv2d(1x1) + BatchNorm params, with BN folded into the conv."""
    def conv(k_, cout, cin):
        kw, kb = jax.random.split(k_)
        w = 0.1 * jax.random.normal(kw, (cout, cin), jnp.float32)
        b = 0.1 * jax.random.normal(kb, (cout,), jnp.float32)
        return w, b

    def bn(k_, c):
        k0, k1, k2, k3 = jax.random.split(k_, 4)
        gamma = 1.0 + 0.1 * jax.random.normal(k0, (c,), jnp.float32)
        beta = 0.1 * jax.random.normal(k1, (c,), jnp.float32)
        mean = 0.1 * jax.random.normal(k2, (c,), jnp.float32)
        var = jnp.abs(jax.random.normal(k3, (c,), jnp.float32)) + 0.5
        return gamma, beta, mean, var

    def fold(w, b, bn_params):
        gamma, beta, mean, var = bn_params
        s = gamma / jnp.sqrt(var + eps)
        return w * s[:, None], ((b - mean) * s + beta)[:, None]   # bias as (Cout, 1)

    k1, k2, k3, k4 = jax.random.split(key, 4)
    w1, b1 = fold(*conv(k1, hidden_channels, in_channels), bn(k2, hidden_channels))
    w2, b2 = fold(*conv(k3, in_channels, hidden_channels), bn(k4, in_channels))
    return (w1, b1, w2, b2)


# ----------------------------- pure-JAX reference -----------------------------
def ref_forward(x_nchw, params):
    B, C, H, W = x_nchw.shape
    N = H * W
    w1, b1, w2, b2 = params

    def one(xc):                                                   # xc: (C, N)
        h = w1 @ xc + b1
        h = 0.5 * h * (1.0 + jax.lax.erf(h * 0.7071067811865476))
        return (w2 @ h + b2) + xc

    out = jax.vmap(one)(x_nchw.reshape(B, C, N).astype(jnp.float32))
    return out.reshape(B, C, H, W)


if __name__ == "__main__":
    B, C, H, W = 2, 4, 16, 16          # N = H*W = 256 nodes per image -> M = 512 folded
    hidden = 32

    key = jax.random.PRNGKey(0)
    kx, kp = jax.random.split(key)
    x = jax.random.normal(kx, (B, C, H, W), jnp.float32)
    params = make_params(kp, C, hidden)

    ref = ref_forward(x, params)

    # Exact-parity path: f32 MXU operands + exact erf GELU (torch defaults).
    out = jax.block_until_ready(ffn_forward(x, params))
    assert out.shape == (B, C, H, W)
    err = float(jnp.max(jnp.abs(out - ref)))
    assert jnp.allclose(out, ref, rtol=1e-4, atol=1e-4), err

    # Production path: bf16 MXU operands (f32 accumulation) + tanh GELU on the EUP.
    out_fast = jax.block_until_ready(ffn_forward(x, params, use_bf16=True, approx_gelu=True))
    err_fast = float(jnp.max(jnp.abs(out_fast - ref)))
    assert jnp.allclose(out_fast, ref, rtol=5e-2, atol=5e-2), err_fast

    print("KERNEL_OK")
</pallas_src>

<mosaic_0001>
module attributes {stable_mosaic.version = 11 : i64} {
  func.func @kernel(%arg0: i32, %arg1: memref<4x256xf32, #tpu.memory_space<vmem>>, %arg2: memref<32x4xf32, #tpu.memory_space<vmem>>, %arg3: memref<32x1xf32, #tpu.memory_space<vmem>>, %arg4: memref<4x32xf32, #tpu.memory_space<vmem>>, %arg5: memref<4x1xf32, #tpu.memory_space<vmem>>, %arg6: memref<4x256xf32, #tpu.memory_space<vmem>>) attributes {dimension_semantics = [#tpu.dimension_semantics<parallel>], iteration_bounds = array<i64: 2>, scalar_prefetch = 0 : i64, scratch_operands = 0 : i64, tpu.core_type = #tpu.core_type<tc>, window_params = [{transform_indices = @transform_0, window_bounds = array<i64: 4, 256>}, {pipeline_mode = #tpu.pipeline_mode<synchronous>, transform_indices = @transform_1, window_bounds = array<i64: 32, 4>}, {pipeline_mode = #tpu.pipeline_mode<synchronous>, transform_indices = @transform_2, window_bounds = array<i64: 32, 1>}, {pipeline_mode = #tpu.pipeline_mode<synchronous>, transform_indices = @transform_3, window_bounds = array<i64: 4, 32>}, {pipeline_mode = #tpu.pipeline_mode<synchronous>, transform_indices = @transform_4, window_bounds = array<i64: 4, 1>}, {transform_indices = @transform_5, window_bounds = array<i64: 4, 256>}]} {
    %c0 = arith.constant 0 : index
    %c0_0 = arith.constant 0 : index
    %0 = vector.load %arg1[%c0, %c0_0] : memref<4x256xf32, #tpu.memory_space<vmem>>, vector<4x256xf32>
    %c0_1 = arith.constant 0 : index
    %c0_2 = arith.constant 0 : index
    %1 = vector.load %arg2[%c0_1, %c0_2] : memref<32x4xf32, #tpu.memory_space<vmem>>, vector<32x4xf32>
    %cst = arith.constant dense<0.000000e+00> : vector<32x256xf32>
    %2 = tpu.matmul %1, %0, %cst {dimension_numbers = #tpu.dot_dimension_numbers<[1], [0], [0], [1], [0, 0, 1, 1], [], []>} : vector<32x4xf32>, vector<4x256xf32>, vector<32x256xf32> -> vector<32x256xf32>
    %c0_3 = arith.constant 0 : index
    %c0_4 = arith.constant 0 : index
    %3 = vector.load %arg3[%c0_3, %c0_4] : memref<32x1xf32, #tpu.memory_space<vmem>>, vector<32x1xf32>
    %4 = vector.broadcast %3 : vector<32x1xf32> to vector<32x256xf32>
    %5 = arith.addf %2, %4 : vector<32x256xf32>
    %cst_5 = arith.constant 5.000000e-01 : f32
    %6 = vector.broadcast %cst_5 : f32 to vector<32x256xf32>
    %7 = arith.mulf %6, %5 : vector<32x256xf32>
    %cst_6 = arith.constant 0.707106769 : f32
    %8 = vector.broadcast %cst_6 : f32 to vector<32x256xf32>
    %9 = arith.mulf %5, %8 : vector<32x256xf32>
    %10 = math.erf %9 : vector<32x256xf32>
    %cst_7 = arith.constant 1.000000e+00 : f32
    %11 = vector.broadcast %cst_7 : f32 to vector<32x256xf32>
    %12 = arith.addf %11, %10 : vector<32x256xf32>
    %13 = arith.mulf %7, %12 : vector<32x256xf32>
    %c0_8 = arith.constant 0 : index
    %c0_9 = arith.constant 0 : index
    %14 = vector.load %arg4[%c0_8, %c0_9] : memref<4x32xf32, #tpu.memory_space<vmem>>, vector<4x32xf32>
    %cst_10 = arith.constant dense<0.000000e+00> : vector<4x256xf32>
    %15 = tpu.matmul %14, %13, %cst_10 {dimension_numbers = #tpu.dot_dimension_numbers<[1], [0], [0], [1], [0, 0, 1, 1], [], []>} : vector<4x32xf32>, vector<32x256xf32>, vector<4x256xf32> -> vector<4x256xf32>
    %c0_11 = arith.constant 0 : index
    %c0_12 = arith.constant 0 : index
    %16 = vector.load %arg5[%c0_11, %c0_12] : memref<4x1xf32, #tpu.memory_space<vmem>>, vector<4x1xf32>
    %17 = vector.broadcast %16 : vector<4x1xf32> to vector<4x256xf32>
    %18 = arith.addf %15, %17 : vector<4x256xf32>
    %19 = arith.addf %18, %0 : vector<4x256xf32>
    %c0_13 = arith.constant 0 : index
    %c0_14 = arith.constant 0 : index
    %20 = vector.load %arg6[%c0_13, %c0_14] : memref<4x256xf32, #tpu.memory_space<vmem>>, vector<4x256xf32>
    tpu.vector_store %arg6[%c0_13, %c0_14], %19 {strides = array<i32>} : memref<4x256xf32, #tpu.memory_space<vmem>>, vector<4x256xf32>,
    return
  }
  func.func @transform_0(%arg0: i32) -> (i32, i32) {
    %c0_i32 = arith.constant 0 : i32
    %c0_i32_0 = arith.constant 0 : i32
    return %c0_i32, %arg0 : i32, i32
  }
  func.func @transform_1(%arg0: i32) -> (i32, i32) {
    %c0_i32 = arith.constant 0 : i32
    %c0_i32_0 = arith.constant 0 : i32
    %c0_i32_1 = arith.constant 0 : i32
    return %c0_i32, %c0_i32_0 : i32, i32
  }
  func.func @transform_2(%arg0: i32) -> (i32, i32) {
    %c0_i32 = arith.constant 0 : i32
    %c0_i32_0 = arith.constant 0 : i32
    %c0_i32_1 = arith.constant 0 : i32
    return %c0_i32, %c0_i32_0 : i32, i32
  }
  func.func @transform_3(%arg0: i32) -> (i32, i32) {
    %c0_i32 = arith.constant 0 : i32
    %c0_i32_0 = arith.constant 0 : i32
    %c0_i32_1 = arith.constant 0 : i32
    return %c0_i32, %c0_i32_0 : i32, i32
  }
  func.func @transform_4(%arg0: i32) -> (i32, i32) {
    %c0_i32 = arith.constant 0 : i32
    %c0_i32_0 = arith.constant 0 : i32
    %c0_i32_1 = arith.constant 0 : i32
    return %c0_i32, %c0_i32_0 : i32, i32
  }
  func.func @transform_5(%arg0: i32) -> (i32, i32) {
    %c0_i32 = arith.constant 0 : i32
    %c0_i32_0 = arith.constant 0 : i32
    return %c0_i32, %arg0 : i32, i32
  }
}

</mosaic_0001>

<llo_original>
// kernel: tpu_custom_call.1
$region0: #{tpu_custom_call.1}
  #allocation0 [shape = 'u32[]', space=smem, size = 0x4, offset = 0x4, fixed_abs, tag = 'smem constant byte address 0x4 - core index']
  #allocation1 [shape = 'u32[144,128]{1,0:T(1,128)}', space=vmem, size = 0x12000, scoped, tag = 'internal scratch']
  %s0 = inlined_call_operand.vmem [shape: f32[4,512], index: 0, kind: input, shape index: {}]
  %s1 = inlined_call_operand.vmem [shape: f32[32,4], index: 1, kind: input, shape index: {}]
  %s2 = inlined_call_operand.vmem [shape: f32[32,1], index: 2, kind: input, shape index: {}]
  %s3 = inlined_call_operand.vmem [shape: f32[4,32], index: 3, kind: input, shape index: {}]
  %s4 = inlined_call_operand.vmem [shape: f32[4,1], index: 4, kind: input, shape index: {}]
  %s5 = inlined_call_operand.hbm [shape: f32[4,512], index: 5, kind: output, shape index: {}]
  %s6 = sld [smem:[#allocation0]]
  $region53: #{tpu_custom_call.1} parent=0
    _
  %s8 = ssub.s32 1, %s6
  %s9 = scalar_select 0, %s8, %s6
  $region1: #{tpu_custom_call.1} parent=0
    #allocation2 [shape = 'u8[8192]{0}', space=vmem, size = 0x2000, scoped, tag = 'output window, operand 0']
    #allocation3 [shape = 's32[2]{0}', space=sflag, size = 0x8, scoped, tag = 'scoped memory for tpu_custom_call.1']
    %10 = vsyncpa [#allocation3], 0
    %s11 = scalar_lea.sflag [#allocation3], 1
    %12 = vsyncpa %s11, 0
    loop: start=0, step=1, limit=4
    $region2: #{tpu_custom_call.1} parent=1 // loop_pre_header
      _
    $region3: #{tpu_custom_call.1} parent=1 // loop_header
      %s14 = sphi 0, %s18
      %p15 = scmp.ge.s32.totalorder %s14, 4
      %s24 = sphi 0, %s26
      %s27 = sphi 0, %s24
      %s28 = sphi 0, %s27
      %s44 = sphi 0, %s28
      %s48 = sphi 0, %s48
      %s50 = sphi 0, %s48
      %s51 = sphi 0, %s50
      %s65 = sphi 0, %s51
      %s69 = sphi 0, %s69
      %s71 = sphi 0, %s69
      %s72 = sphi 0, %s71
      %s86 = sphi 0, %s72
      %s90 = sphi 0, %s90
      %s92 = sphi 0, %s90
      %s93 = sphi 0, %s92
      %s107 = sphi 0, %s93
      %s111 = sphi 0, %s111
      %s113 = sphi 0, %s111
      %s114 = sphi 0, %s113
      %s128 = sphi 0, %s114
      %s134 = sphi 0, %s136
      %s137 = sphi 0, %s134
      %s138 = sphi 0, %s137
      %s154 = sphi 0, %s138
    $region4: #{tpu_custom_call.1} parent=1 // loop_header_branch
      %17 = sbr.rel (%p15) target = $region8
    $region5: #{tpu_custom_call.1} parent=1 // loop_body
      %s19 = ssub.s32 %s14, 1
      %s20 = ssub.s32 %s14, 2
      %s21 = sadd.s32 %s14, 1
      %s22 = ssub.s32 %s14, %s21
      %p23 = scmp.eq.s32.totalorder %s22, 0
      %s25 = sadd.s32 %s24, 1
      %s26 = scalar_select %p23, %s24, %s25
      %p29 = pneg %p23
      %p30 = scmp.eq.s32.totalorder %s14, 1
      %p31 = por %p29, %p30
      %p32 = scmp.ne.s32.totalorder %s24, %s27
      %p33 = scmp.eq.s32.totalorder %s14, 0
      %p34 = por %p32, %p33
      %p35 = scmp.ne.s32.totalorder %s24, %s27
      %p36 = scmp.eq.s32.totalorder %s19, 1
      %p37 = por %p35, %p36
      %p38 = scmp.ne.s32.totalorder %s27, %s28
      %p39 = scmp.eq.s32.totalorder %s19, 0
      %p40 = por %p38, %p39
      %p41 = scmp.ne.s32.totalorder %s27, %s28
      %p42 = scmp.eq.s32.totalorder %s20, 1
      %p43 = por %p41, %p42
      %p45 = scmp.ne.s32.totalorder %s28, %s44
      %p46 = scmp.eq.s32.totalorder %s20, 0
      %p47 = por %p45, %p46
      %s49 = sadd.s32 %s48, 1
      %p52 = scmp.eq.s32.totalorder %s14, 1
      %p53 = scmp.ne.s32.totalorder %s48, %s50
      %p54 = scmp.eq.s32.totalorder %s14, 0
      %p55 = por %p53, %p54
      %p56 = scmp.ne.s32.totalorder %s48, %s50
      %p57 = scmp.eq.s32.totalorder %s19, 1
      %p58 = por %p56, %p57
      %p59 = scmp.ne.s32.totalorder %s50, %s51
      %p60 = scmp.eq.s32.totalorder %s19, 0
      %p61 = por %p59, %p60
      %p62 = scmp.ne.s32.totalorder %s50, %s51
      %p63 = scmp.eq.s32.totalorder %s20, 1
      %p64 = por %p62, %p63
      %p66 = scmp.ne.s32.totalorder %s51, %s65
      %p67 = scmp.eq.s32.totalorder %s20, 0
      %p68 = por %p66, %p67
      %s70 = sadd.s32 %s69, 1
      %p73 = scmp.eq.s32.totalorder %s14, 1
      %p74 = scmp.ne.s32.totalorder %s69, %s71
      %p75 = scmp.eq.s32.totalorder %s14, 0
      %p76 = por %p74, %p75
      %p77 = scmp.ne.s32.totalorder %s69, %s71
      %p78 = scmp.eq.s32.totalorder %s19, 1
      %p79 = por %p77, %p78
      %p80 = scmp.ne.s32.totalorder %s71, %s72
      %p81 = scmp.eq.s32.totalorder %s19, 0
      %p82 = por %p80, %p81
      %p83 = scmp.ne.s32.totalorder %s71, %s72
      %p84 = scmp.eq.s32.totalorder %s20, 1
      %p85 = por %p83, %p84
      %p87 = scmp.ne.s32.totalorder %s72, %s86
      %p88 = scmp.eq.s32.totalorder %s20, 0
      %p89 = por %p87, %p88
      %s91 = sadd.s32 %s90, 1
      %p94 = scmp.eq.s32.totalorder %s14, 1
      %p95 = scmp.ne.s32.totalorder %s90, %s92
      %p96 = scmp.eq.s32.totalorder %s14, 0
      %p97 = por %p95, %p96
      %p98 = scmp.ne.s32.totalorder %s90, %s92
      %p99 = scmp.eq.s32.totalorder %s19, 1
      %p100 = por %p98, %p99
      %p101 = scmp.ne.s32.totalorder %s92, %s93
      %p102 = scmp.eq.s32.totalorder %s19, 0
      %p103 = por %p101, %p102
      %p104 = scmp.ne.s32.totalorder %s92, %s93
      %p105 = scmp.eq.s32.totalorder %s20, 1
      %p106 = por %p104, %p105
      %p108 = scmp.ne.s32.totalorder %s93, %s107
      %p109 = scmp.eq.s32.totalorder %s20, 0
      %p110 = por %p108, %p109
      %s112 = sadd.s32 %s111, 1
      %p115 = scmp.eq.s32.totalorder %s14, 1
      %p116 = scmp.ne.s32.totalorder %s111, %s113
      %p117 = scmp.eq.s32.totalorder %s14, 0
      %p118 = por %p116, %p117
      %p119 = scmp.ne.s32.totalorder %s111, %s113
      %p120 = scmp.eq.s32.totalorder %s19, 1
      %p121 = por %p119, %p120
      %p122 = scmp.ne.s32.totalorder %s113, %s114
      %p123 = scmp.eq.s32.totalorder %s19, 0
      %p124 = por %p122, %p123
      %p125 = scmp.ne.s32.totalorder %s113, %s114
      %p126 = scmp.eq.s32.totalorder %s20, 1
      %p127 = por %p125, %p126
      %p129 = scmp.ne.s32.totalorder %s114, %s128
      %p130 = scmp.eq.s32.totalorder %s20, 0
      %p131 = por %p129, %p130
      %s132 = ssub.s32 %s14, %s21
      %p133 = scmp.eq.s32.totalorder %s132, 0
      %s135 = sadd.s32 %s134, 1
      %s136 = scalar_select %p133, %s134, %s135
      %p139 = pneg %p133
      %p140 = scmp.eq.s32.totalorder %s14, 1
      %p141 = por %p139, %p140
      %p142 = scmp.ne.s32.totalorder %s134, %s137
      %p143 = scmp.eq.s32.totalorder %s14, 0
      %p144 = por %p142, %p143
      %p145 = scmp.ne.s32.totalorder %s134, %s137
      %p146 = scmp.eq.s32.totalorder %s19, 1
      %p147 = por %p145, %p146
      %p148 = scmp.ne.s32.totalorder %s137, %s138
      %p149 = scmp.eq.s32.totalorder %s19, 0
      %p150 = por %p148, %p149
      %p151 = scmp.ne.s32.totalorder %s137, %s138
      %p152 = scmp.eq.s32.totalorder %s20, 1
      %p153 = por %p151, %p152
      %p155 = scmp.ne.s32.totalorder %s138, %s154
      %p156 = scmp.eq.s32.totalorder %s20, 0
      %p157 = por %p155, %p156
      %p158 = scmp.le.s32.totalorder 1, %s14
      %p159 = scmp.lt.s32.totalorder %s14, 3
      %p160 = pnand %p158, %p159
      %p161 = pneg %p160
      // Predicated region
      $region9: #{tpu_custom_call.1} parent=5 // pred_check
        _
      $region10: #{tpu_custom_call.1} parent=5 // pred_check_branch
        %163 = sbr.rel (%p160) target = $region12
      $region11: #{tpu_custom_call.1} parent=5 // pred_region
        %s164 = ssub.s32 %s14, 1
        // Predicated region
        $region13: #{tpu_custom_call.1} parent=11 // pred_check
          %p165 = pneg %p61
        $region14: #{tpu_custom_call.1} parent=11 // pred_check_branch
          %167 = sbr.rel (%p165) target = $region16
        $region15: #{tpu_custom_call.1} parent=11 // pred_region
          _
        $region16: #{tpu_custom_call.1} parent=11 // pred_fallthru
          _
        // Predicated region
        $region17: #{tpu_custom_call.1} parent=11 // pred_check
          %p168 = pneg %p82
        $region18: #{tpu_custom_call.1} parent=11 // pred_check_branch
          %170 = sbr.rel (%p168) target = $region20
        $region19: #{tpu_custom_call.1} parent=11 // pred_region
          _
        $region20: #{tpu_custom_call.1} parent=11 // pred_fallthru
          _
        // Predicated region
        $region21: #{tpu_custom_call.1} parent=11 // pred_check
          %p171 = pneg %p103
        $region22: #{tpu_custom_call.1} parent=11 // pred_check_branch
          %173 = sbr.rel (%p171) target = $region24
        $region23: #{tpu_custom_call.1} parent=11 // pred_region
          _
        $region24: #{tpu_custom_call.1} parent=11 // pred_fallthru
          _
        // Predicated region
        $region25: #{tpu_custom_call.1} parent=11 // pred_check
          %p174 = pneg %p124
        $region26: #{tpu_custom_call.1} parent=11 // pred_check_branch
          %176 = sbr.rel (%p174) target = $region28
        $region27: #{tpu_custom_call.1} parent=11 // pred_region
          _
        $region28: #{tpu_custom_call.1} parent=11 // pred_fallthru
          _
      $region12: #{tpu_custom_call.1} parent=5 // pred_fallthru
        _
      %p177 = scmp.lt.s32.totalorder %s14, 2
      // Predicated region
      $region29: #{tpu_custom_call.1} parent=5 // pred_check
        %p178 = pneg %p177
      $region30: #{tpu_custom_call.1} parent=5 // pred_check_branch
        %180 = sbr.rel (%p178) target = $region32
      $region31: #{tpu_custom_call.1} parent=5 // pred_region
        // Predicated region
        $region33: #{tpu_custom_call.1} parent=31 // pred_check
          %p181 = pneg %p34
        $region34: #{tpu_custom_call.1} parent=31 // pred_check_branch
          %183 = sbr.rel (%p181) target = $region36
        $region35: #{tpu_custom_call.1} parent=31 // pred_region
          %s184 = smul.u32 2, %s14
          %p185 = scmp.lt.s32.totalorder %s184, 3
          %s186 = scalar_select %p185, %s184, 3
          %s187 = smul.addr %s186, 4
          %s188 = scalar_lea.vmem %s0, %s187
          %s189 = smul.u32 2, %s14
        $region36: #{tpu_custom_call.1} parent=31 // pred_fallthru
          _
      $region32: #{tpu_custom_call.1} parent=5 // pred_fallthru
        _
      %p190 = scmp.le.s32.totalorder 1, %s14
      %p191 = scmp.lt.s32.totalorder %s14, 3
      %p192 = pnand %p190, %p191
      %p193 = pneg %p192
      // Predicated region
      $region37: #{tpu_custom_call.1} parent=5 // pred_check
        _
      $region38: #{tpu_custom_call.1} parent=5 // pred_check_branch
        %195 = sbr.rel (%p192) target = $region40
      $region39: #{tpu_custom_call.1} parent=5 // pred_region
        %s196 = ssub.s32 %s14, 1
        %s197 = smul.u32 2, %s19
        %p198 = scmp.lt.s32.totalorder %s197, 3
        %s199 = scalar_select %p198, %s197, 3
        %s200 = smul.addr %s199, 4
        %s201 = scalar_lea.vmem %s0, %s200
        %p202 = pneg %p40
        %p203 = pneg %p37
        %p204 = pneg %p61
        %p205 = pneg %p58
        %p206 = pneg %p82
        %p207 = pneg %p79
        %p208 = pneg %p103
        %p209 = pneg %p100
        %p210 = pneg %p124
        %p211 = pneg %p121
        %p212 = pneg %p150
        %p213 = pneg %p147
        %s214 = sand.u32 %s137, 1
        %s215 = scalar_lea.sflag [#allocation3], %s214
        %s216 = sand.u32 %s137, 1
        %s217 = smul.addr %s216, 8
        %s218 = scalar_lea.vmem [#allocation2], %s217
        %s219 = smul.u32 2, %s19
        %p220 = scmp.lt.s32.totalorder %s219, 3
        %s221 = scalar_select %p220, %s219, 3
        %s222 = smul.addr %s221, 4
        %s223 = scalar_lea.vmem %s0, %s222
        %s224 = smul.u32 2, %s19
        %s225 = smul.u32 2, %s19
        %v226 = vld [vmem:[%s223] sm:$0xff]
        %v227 = vld [vmem:[%s1] sm:$0xff]
        %v228 = vld [vmem:[%s1 + $0x8] sm:$0xff]
        %v229 = vld [vmem:[%s1 + $0x10] sm:$0xff]
        %v230 = vld [vmem:[%s1 + $0x18] sm:$0xff]
        %v231 = vld [vmem:[%s2] sm:$0xff]
        %v232 = vld [vmem:[%s2 + $0x8] sm:$0xff]
        %v233 = vld [vmem:[%s2 + $0x10] sm:$0xff]
        %v234 = vld [vmem:[%s2 + $0x18] sm:$0xff]
        %236 = vset.pattern.permute.xlu0 0
        %237 = vperm.xlu0 %236, %v231
        %v238 = vpop.permute.xlu0 %237
        %241 = vset.pattern.permute.xlu0 0
        %242 = vperm.xlu0 %241, %v232
        %v243 = vpop.permute.xlu0 %242
        %246 = vset.pattern.permute.xlu0 0
        %247 = vperm.xlu0 %246, %v233
        %v248 = vpop.permute.xlu0 %247
        %251 = vset.pattern.permute.xlu0 0
        %252 = vperm.xlu0 %251, %v234
        %v253 = vpop.permute.xlu0 %252
        %v256 = vcombine.high %v226, %v226
        %vm257 = vcmask 31744
        %v259 = vsel %vm257, %v227, 0
        %v262 = vsel %vm257, %v228, 0
        %v265 = vsel %vm257, %v229, 0
        %v268 = vsel %vm257, %v230, 0
        %vm270 = vcmask 1043456
        %v271 = vsel %vm270, %v226, 0
        %v273 = vsel %vm270, %v256, 0
        %275 = vmatprep.subr.mxu0 0.0
        %276 = vmatpush1.msra.mxu0 0.0
        %277 = vmatprep.subr.mxu0 0.0
        %278 = vmatpush1.msra.mxu0 0.0
        %279 = vmatprep.subr.mxu0 0.0
        %280 = vmatpush1.msra.mxu0 0.0
        %281 = vmatprep.subr.mxu0 0.0
        %282 = vmatpush1.msra.mxu0 0.0
        %283 = vmatprep.subr.mxu0 0.0
        %284 = vmatpush1.msra.mxu0 0.0
        %285 = vmatprep.subr.mxu0 0.0
        %286 = vmatpush1.msra.mxu0 0.0
        %287 = vmatprep.subr.mxu0 0.0
        %288 = vmatpush1.msra.mxu0 0.0
        %289 = vmatprep.subr.mxu0 0.0
        %290 = vmatpush1.msra.mxu0 0.0
        %291 = vmatprep.subr.mxu0 0.0
        %292 = vmatpush1.msra.mxu0 0.0
        %293 = vmatprep.subr.mxu0 0.0
        %294 = vmatpush1.msra.mxu0 0.0
        %295 = vmatprep.subr.mxu0 0.0
        %296 = vmatpush1.msra.mxu0 0.0
        %297 = vmatprep.subr.mxu0 0.0
        %298 = vmatpush1.msra.mxu0 0.0
        %299 = vmatprep.subr.mxu0 0.0
        %300 = vmatpush1.msra.mxu0 0.0
        %301 = vmatprep.subr.mxu0 0.0
        %302 = vmatpush1.msra.mxu0 0.0
        %303 = vmatprep.subr.mxu0 0.0
        %304 = vmatpush1.msra.mxu0 0.0
        %305 = vmatprep.subr.mxu0 %v273
        %306 = vmatpush1.msra.mxu0 %v271
        %307 = vmatprep.subr.mxu0 0.0
        %308 = vmatpush2.msra.mxu0 0.0
        %309 = vmatprep.subr.mxu0 0.0
        %310 = vmatpush2.msra.mxu0 0.0
        %311 = vmatprep.subr.mxu0 0.0
        %312 = vmatpush2.msra.mxu0 0.0
        %313 = vmatprep.subr.mxu0 0.0
        %314 = vmatpush2.msra.mxu0 0.0
        %315 = vmatprep.subr.mxu0 0.0
        %316 = vmatpush2.msra.mxu0 0.0
        %317 = vmatprep.subr.mxu0 0.0
        %318 = vmatpush2.msra.mxu0 0.0
        %319 = vmatprep.subr.mxu0 0.0
        %320 = vmatpush2.msra.mxu0 0.0
        %321 = vmatprep.subr.mxu0 0.0
        %322 = vmatpush2.msra.mxu0 0.0
        %323 = vmatprep.subr.mxu0 0.0
        %324 = vmatpush2.msra.mxu0 0.0
        %325 = vmatprep.subr.mxu0 0.0
        %326 = vmatpush2.msra.mxu0 0.0
        %327 = vmatprep.subr.mxu0 0.0
        %328 = vmatpush2.msra.mxu0 0.0
        %329 = vmatprep.subr.mxu0 0.0
        %330 = vmatpush2.msra.mxu0 0.0
        %331 = vmatprep.subr.mxu0 0.0
        %332 = vmatpush2.msra.mxu0 0.0
        %333 = vmatprep.subr.mxu0 0.0
        %334 = vmatpush2.msra.mxu0 0.0
        %335 = vmatprep.subr.mxu0 0.0
        %336 = vmatpush2.msra.mxu0 0.0
        %337 = vmatprep.subr.mxu0 0.0
        %338 = vmatpush2.msra.mxu0 0.0
        %339 = vmatprep.mubr.f32.mxu0 0.0
        %340 = vmatmul.mubr.f32.gmra.mxu0 %v259
        %v341 = vpop.f32.mrf.mxu0
        %v342 = vadd.f32 %v238, %v341
        %v343 = vpop.f32.mrf.mxu0
        %v344 = vadd.f32 %v238, %v343
        %345 = vmatprep.mubr.f32.mxu0 0.0
        %346 = vmatmul.mubr.f32.gmra.mxu0 %v262
        %v347 = vpop.f32.mrf.mxu0
        %v348 = vadd.f32 %v243, %v347
        %v349 = vpop.f32.mrf.mxu0
        %v350 = vadd.f32 %v243, %v349
        %351 = vmatprep.mubr.f32.mxu0 0.0
        %352 = vmatmul.mubr.f32.gmra.mxu0 %v265
        %v353 = vpop.f32.mrf.mxu0
        %v354 = vadd.f32 %v248, %v353
        %v355 = vpop.f32.mrf.mxu0
        %v356 = vadd.f32 %v248, %v355
        %357 = vmatprep.mubr.f32.mxu0 0.0
        %358 = vmatmul.mubr.f32.gmra.mxu0 %v268
        %v359 = vpop.f32.mrf.mxu0
        %v360 = vadd.f32 %v253, %v359
        %v361 = vpop.f32.mrf.mxu0
        %v362 = vadd.f32 %v253, %v361
        %363 = vdwg.mxu0
        %v364 = vmul.f32 %v342, 0.5
        %v365 = vmul.f32 %v344, 0.5
        %v366 = vmul.f32 %v348, 0.5
        %v367 = vmul.f32 %v350, 0.5
        %v368 = vmul.f32 %v354, 0.5
        %v369 = vmul.f32 %v356, 0.5
        %v370 = vmul.f32 %v360, 0.5
        %v371 = vmul.f32 %v362, 0.5
        %v372 = vmul.f32 %v342, 0.70710677
        %v373 = vmul.f32 %v344, 0.70710677
        %v374 = vmul.f32 %v348, 0.70710677
        %v375 = vmul.f32 %v350, 0.70710677
        %v376 = vmul.f32 %v354, 0.70710677
        %v377 = vmul.f32 %v356, 0.70710677
        %v378 = vmul.f32 %v360, 0.70710677
        %v379 = vmul.f32 %v362, 0.70710677
        %v380 = verf.f32.pop %v372
        %v381 = verf.f32.pop %v373
        %v382 = verf.f32.pop %v374
        %v383 = verf.f32.pop %v375
        %v384 = verf.f32.pop %v376
        %v385 = verf.f32.pop %v377
        %v386 = verf.f32.pop %v378
        %v387 = verf.f32.pop %v379
        %v388 = vadd.f32 %v380, 1.0
        %v389 = vadd.f32 %v381, 1.0
        %v390 = vadd.f32 %v382, 1.0
        %v391 = vadd.f32 %v383, 1.0
        %v392 = vadd.f32 %v384, 1.0
        %v393 = vadd.f32 %v385, 1.0
        %v394 = vadd.f32 %v386, 1.0
        %v395 = vadd.f32 %v387, 1.0
        %v396 = vmul.f32 %v364, %v388
        %v397 = vmul.f32 %v365, %v389
        %v398 = vmul.f32 %v366, %v390
        %v399 = vmul.f32 %v367, %v391
        %v400 = vmul.f32 %v368, %v392
        %v401 = vmul.f32 %v369, %v393
        %v402 = vmul.f32 %v370, %v394
        %v403 = vmul.f32 %v371, %v395
        %v404 = vld [vmem:[%s3] sm:$0xf]
        %v405 = vld [vmem:[%s4] sm:$0xf]
        %407 = vset.pattern.permute.xlu0 0
        %408 = vperm.xlu0 %407, %v405
        %v409 = vpop.permute.xlu0 %408
        %vm411 = vcmask 261120
        %v413 = vsel %vm411, %v404, 0
        %415 = vmatprep.subr.mxu0 0.0
        %416 = vmatpush1.msra.mxu0 0.0
        %417 = vmatprep.subr.mxu0 0.0
        %418 = vmatpush1.msra.mxu0 0.0
        %419 = vmatprep.subr.mxu0 0.0
        %420 = vmatpush1.msra.mxu0 0.0
        %421 = vmatprep.subr.mxu0 0.0
        %422 = vmatpush1.msra.mxu0 0.0
        %423 = vmatprep.subr.mxu0 0.0
        %424 = vmatpush1.msra.mxu0 0.0
        %425 = vmatprep.subr.mxu0 0.0
        %426 = vmatpush1.msra.mxu0 0.0
        %427 = vmatprep.subr.mxu0 0.0
        %428 = vmatpush1.msra.mxu0 0.0
        %429 = vmatprep.subr.mxu0 0.0
        %430 = vmatpush1.msra.mxu0 0.0
        %431 = vmatprep.subr.mxu0 0.0
        %432 = vmatpush1.msra.mxu0 0.0
        %433 = vmatprep.subr.mxu0 0.0
        %434 = vmatpush1.msra.mxu0 0.0
        %435 = vmatprep.subr.mxu0 0.0
        %436 = vmatpush1.msra.mxu0 0.0
        %437 = vmatprep.subr.mxu0 0.0
        %438 = vmatpush1.msra.mxu0 0.0
        %439 = vmatprep.subr.mxu0 %v403
        %440 = vmatpush1.msra.mxu0 %v402
        %441 = vmatprep.subr.mxu0 %v401
        %442 = vmatpush1.msra.mxu0 %v400
        %443 = vmatprep.subr.mxu0 %v399
        %444 = vmatpush1.msra.mxu0 %v398
        %445 = vmatprep.subr.mxu0 %v397
        %446 = vmatpush1.msra.mxu0 %v396
        %447 = vmatprep.subr.mxu0 0.0
        %448 = vmatpush2.msra.mxu0 0.0
        %449 = vmatprep.subr.mxu0 0.0
        %450 = vmatpush2.msra.mxu0 0.0
        %451 = vmatprep.subr.mxu0 0.0
        %452 = vmatpush2.msra.mxu0 0.0
        %453 = vmatprep.subr.mxu0 0.0
        %454 = vmatpush2.msra.mxu0 0.0
        %455 = vmatprep.subr.mxu0 0.0
        %456 = vmatpush2.msra.mxu0 0.0
        %457 = vmatprep.subr.mxu0 0.0
        %458 = vmatpush2.msra.mxu0 0.0
        %459 = vmatprep.subr.mxu0 0.0
        %460 = vmatpush2.msra.mxu0 0.0
        %461 = vmatprep.subr.mxu0 0.0
        %462 = vmatpush2.msra.mxu0 0.0
        %463 = vmatprep.subr.mxu0 0.0
        %464 = vmatpush2.msra.mxu0 0.0
        %465 = vmatprep.subr.mxu0 0.0
        %466 = vmatpush2.msra.mxu0 0.0
        %467 = vmatprep.subr.mxu0 0.0
        %468 = vmatpush2.msra.mxu0 0.0
        %469 = vmatprep.subr.mxu0 0.0
        %470 = vmatpush2.msra.mxu0 0.0
        %471 = vmatprep.subr.mxu0 0.0
        %472 = vmatpush2.msra.mxu0 0.0
        %473 = vmatprep.subr.mxu0 0.0
        %474 = vmatpush2.msra.mxu0 0.0
        %475 = vmatprep.subr.mxu0 0.0
        %476 = vmatpush2.msra.mxu0 0.0
        %477 = vmatprep.subr.mxu0 0.0
        %478 = vmatpush2.msra.mxu0 0.0
        %479 = vmatprep.mubr.f32.mxu0 0.0
        %480 = vmatmul.mubr.f32.gmra.mxu0 %v413
        %v481 = vpop.f32.mrf.mxu0
        %v482 = vadd.f32 %v409, %v481
        %v483 = vpop.f32.mrf.mxu0
        %v484 = vadd.f32 %v409, %v483
        %485 = vdwg.mxu0
        %v487 = vadd.f32 %v482, %v226
        %v488 = vadd.f32 %v484, %v256
        %v491 = vcombine.low %v487, %v488
        %493 = vst [vmem:[%s218] sm:$0xff] %v491
        %s494 = sand.u32 %s137, 1
        %s495 = scalar_lea.sflag [#allocation3], %s494
        %s496 = sand.u32 %s137, 1
        %s497 = smul.addr %s496, 8
        %s498 = scalar_lea.vmem [#allocation2], %s497
        // Predicated region
        $region41: #{tpu_custom_call.1} parent=39 // pred_check
          %p499 = pneg %p147
        $region42: #{tpu_custom_call.1} parent=39 // pred_check_branch
          %501 = sbr.rel (%p499) target = $region44
        $region43: #{tpu_custom_call.1} parent=39 // pred_region
          %s502 = smul.u32 2, %s19
          %s504 = ssub.s32 128, 128
          %505 = vsyncadd %s495, %s504
          %s506 = smul.addr %s502, 64
          %s507 = scalar_lea.hbm %s5, %s506
          %s509 = sshll.u32 %s498, 4
          %s510 = int_to_ptr.vmem [resolvable:$true] %s509
          %512 = dma.vmem_to_hbm [thread:$0]  %s510, 128, %s507, %s495
        $region44: #{tpu_custom_call.1} parent=39 // pred_fallthru
          _
      $region40: #{tpu_custom_call.1} parent=5 // pred_fallthru
        _
      %p513 = scmp.le.s32.totalorder 2, %s14
      // Predicated region
      $region45: #{tpu_custom_call.1} parent=5 // pred_check
        %p514 = pneg %p513
      $region46: #{tpu_custom_call.1} parent=5 // pred_check_branch
        %516 = sbr.rel (%p514) target = $region48
      $region47: #{tpu_custom_call.1} parent=5 // pred_region
        %s517 = ssub.s32 %s14, 2
        // Predicated region
        $region49: #{tpu_custom_call.1} parent=47 // pred_check
          %p518 = pneg %p153
        $region50: #{tpu_custom_call.1} parent=47 // pred_check_branch
          %520 = sbr.rel (%p518) target = $region52
        $region51: #{tpu_custom_call.1} parent=47 // pred_region
          %s521 = sand.u32 %s138, 1
          %s522 = scalar_lea.sflag [#allocation3], %s521
          %s523 = sand.u32 %s138, 1
          %s524 = smul.addr %s523, 8
          %s525 = scalar_lea.vmem [#allocation2], %s524
          %526 = dma.done %s522, 128
        $region52: #{tpu_custom_call.1} parent=47 // pred_fallthru
          _
      $region48: #{tpu_custom_call.1} parent=5 // pred_fallthru
        _
    $region6: #{tpu_custom_call.1} parent=1 // loop_footer
      %s18 = sadd.s32 1, %s14
    $region7: #{tpu_custom_call.1} parent=1 // loop_footer_branch
      %13 = sbr.rel target = $region3
    $region8: #{tpu_custom_call.1} parent=1 // loop_exit
      _
    %527 = vsyncpa [#allocation3], 1
    %s528 = scalar_lea.sflag [#allocation3], 1
    %529 = vsyncpa %s528, 1

</llo_original>
